<compile_context>
chip_gen: v7x
topology: tpu7x:2x2x1
jax: 0.10.0
libtpu: 0.0.40
codegen_flags: <defaults>
</compile_context>

<pallas_src>
import numpy as np
import jax
import jax.numpy as jnp
from jax import lax
from jax.experimental import pallas as pl
from jax.experimental.pallas import tpu as pltpu

POOL = 4  # AdaptiveAvgPool2d(4)


# ---------------------------------------------------------------------------
# Pallas kernel: out = feat_big * gate  (gate broadcast along spatial lanes).
# ---------------------------------------------------------------------------
def _scale_kernel(g_ref, fb_ref, o_ref):
    # g_ref: (1, C_out, 1) already in feat_big dtype; fb_ref / o_ref: (1, C_out, TS)
    o_ref[...] = fb_ref[...] * g_ref[...]


# ---------------------------------------------------------------------------
# Host-side helpers
# ---------------------------------------------------------------------------
def _adaptive_avg_pool4(x):
    """AdaptiveAvgPool2d(4) in plain JAX (output is only B*C*16 floats)."""
    b, c, h, w = x.shape
    if h % POOL == 0 and w % POOL == 0:
        return x.reshape(b, c, POOL, h // POOL, POOL, w // POOL).mean(axis=(3, 5))

    # Non-divisible case: tiny static per-axis averaging matrices (Hs x 4), (Ws x 4).
    def pool_mat(n):
        m = np.zeros((n, POOL), dtype=np.float32)
        for i in range(POOL):
            lo = (i * n) // POOL
            hi = -(-((i + 1) * n) // POOL)  # ceil
            m[lo:hi, i] = 1.0 / (hi - lo)
        return jnp.asarray(m)

    return jnp.einsum('bchw,hi,wj->bcij', x, pool_mat(h), pool_mat(w))


def _spectral_normalize(w):
    """spectral_norm forward: divide the conv weight by its largest singular value.
    jit-compatible (all-jnp, no host numpy / host sync).
    # TODO(synk): PyTorch uses a one-step power-iteration estimate carried in
    # module buffers (u/v); exact SVD is used here, so outputs will not
    # bit-match a real checkpoint's running state."""
    w32 = w.astype(jnp.float32)
    mat = w32.reshape(w.shape[0], -1)
    sigma = jnp.linalg.svd(mat, compute_uv=False)[0]
    return w32 / sigma


def _pick_spatial_tile(s, c_out, itemsize, target_bytes=8 << 20, min_tiles=1):
    """Lane tile: multiple of 128, one (1, C_out, ts) buffer <= target_bytes.
    Used with grid = pl.cdiv(s, ts); the last partial block is masked by Pallas.
    Always bounded -> double-buffered in+out (~4*target_bytes) fits every chip,
    including v7x's 64 MiB VMEM."""
    if s < 128:
        return s  # full-extent block; trivially small
    cap = max(128, (target_bytes // max(1, c_out * itemsize)) // 128 * 128)
    ts = min(cap, pl.cdiv(s, 128) * 128)        # never bigger than needed
    if min_tiles > 1:
        # Keep both v7x TensorCores busy (>= min_tiles spatial steps) when B == 1.
        split = ((s - 1) // 128) * 128          # largest 128-multiple < s
        if split >= 128:
            ts = min(ts, split)
    return ts


# ---------------------------------------------------------------------------
# Wrapper
# ---------------------------------------------------------------------------
def se_block(feat_small, feat_big, w1, w2, donate_feat_big=False):
    """feat_small: (B, C_in, Hs, Ws); feat_big: (B, C_out, Hb, Wb) — both NCHW.
    w1: (C_out, C_in, 4, 4); w2: (C_out, C_out, 1, 1). Returns NCHW output."""
    B, c_in, hs, ws = feat_small.shape
    _, c_out, hb, wb = feat_big.shape

    w1n = _spectral_normalize(w1)                         # (C_out, C_in, 4, 4)
    w2n = _spectral_normalize(w2).reshape(c_out, c_out)   # (C_out, C_out)

    # Squeeze / gate path: tiny matmuls, orders of magnitude below one MXU
    # tile -> plain XLA at HIGHEST precision (free; not on the hot path).
    pooled = _adaptive_avg_pool4(feat_small.astype(jnp.float32))   # (B, C_in, 4, 4)
    h = jnp.einsum('bckl,ockl->bo', pooled, w1n,
                   precision=lax.Precision.HIGHEST)
    h = h * jax.nn.sigmoid(h)                                      # Swish
    g = jax.nn.sigmoid(jnp.einsum('bo,po->bp', h, w2n,
                                  precision=lax.Precision.HIGHEST))
    gate3 = g.astype(feat_big.dtype).reshape(B, c_out, 1)          # cast once

    # Excite path: memory-bound broadcast multiply; NCHW kept via free reshape.
    s = hb * wb
    fb_flat = feat_big.reshape(B, c_out, s)                        # no transpose
    itemsize = jnp.dtype(feat_big.dtype).itemsize
    min_tiles = 2 if B == 1 else 1                 # v7x: 2 TensorCores per chip
    ts = _pick_spatial_tile(s, c_out, itemsize, min_tiles=min_tiles)
    grid = (B, pl.cdiv(s, ts))

    out = pl.pallas_call(
        _scale_kernel,
        out_shape=jax.ShapeDtypeStruct((B, c_out, s), feat_big.dtype),
        grid=grid,
        in_specs=[
            pl.BlockSpec((1, c_out, 1), lambda b, j: (b, 0, 0)),
            pl.BlockSpec((1, c_out, ts), lambda b, j: (b, 0, j)),
        ],
        out_specs=pl.BlockSpec((1, c_out, ts), lambda b, j: (b, 0, j)),
        compiler_params=pltpu.CompilerParams(
            dimension_semantics=("parallel", "parallel"),
            vmem_limit_bytes=48 * 1024 * 1024,
        ),
        # fb_flat is input index 1; alias to the output only when the caller
        # can donate feat_big (saves a feat_big-sized HBM allocation).
        input_output_aliases=({1: 0} if donate_feat_big else {}),
    )(gate3, fb_flat)

    return out.reshape(B, c_out, hb, wb)


# ---------------------------------------------------------------------------
# Pure-JAX reference (same spectral normalization), NCHW in / NCHW out.
# ---------------------------------------------------------------------------
def se_block_reference(feat_small, feat_big, w1, w2):
    _, c_out, _, _ = feat_big.shape
    w1n = _spectral_normalize(w1)
    w2n = _spectral_normalize(w2).reshape(c_out, c_out)
    pooled = _adaptive_avg_pool4(feat_small.astype(jnp.float32))
    h = jnp.einsum('bckl,ockl->bo', pooled, w1n, precision=lax.Precision.HIGHEST)
    h = h * jax.nn.sigmoid(h)
    g = jax.nn.sigmoid(jnp.einsum('bo,po->bp', h, w2n,
                                  precision=lax.Precision.HIGHEST))
    return feat_big * g[:, :, None, None].astype(feat_big.dtype)


if __name__ == "__main__":
    key = jax.random.PRNGKey(0)

    # Case 1: pool-divisible spatial, B=2, spatial a multiple of 128.
    k1, k2, k3, k4, key = jax.random.split(key, 5)
    B, c_in, c_out = 2, 8, 16
    hs = ws = 8
    hb = wb = 16
    feat_small = jax.random.normal(k1, (B, c_in, hs, ws), dtype=jnp.float32)
    feat_big = jax.random.normal(k2, (B, c_out, hb, wb), dtype=jnp.float32)
    w1 = jax.random.normal(k3, (c_out, c_in, 4, 4), dtype=jnp.float32) * 0.1
    w2 = jax.random.normal(k4, (c_out, c_out, 1, 1), dtype=jnp.float32) * 0.1

    out = jax.block_until_ready(se_block(feat_small, feat_big, w1, w2))
    ref = se_block_reference(feat_small, feat_big, w1, w2)
    np.testing.assert_allclose(np.asarray(out), np.asarray(ref),
                               rtol=1e-5, atol=1e-5)

    # Case 2: B=1 (dual-TC split path), non-pool-divisible small spatial,
    # big spatial not a multiple of 128 (cdiv-masked last block).
    k1, k2, k3, k4, key = jax.random.split(key, 5)
    B, c_in, c_out = 1, 4, 8
    hs = ws = 6
    hb = wb = 20
    feat_small = jax.random.normal(k1, (B, c_in, hs, ws), dtype=jnp.float32)
    feat_big = jax.random.normal(k2, (B, c_out, hb, wb), dtype=jnp.float32)
    w1 = jax.random.normal(k3, (c_out, c_in, 4, 4), dtype=jnp.float32) * 0.1
    w2 = jax.random.normal(k4, (c_out, c_out, 1, 1), dtype=jnp.float32) * 0.1

    out = jax.block_until_ready(se_block(feat_small, feat_big, w1, w2))
    ref = se_block_reference(feat_small, feat_big, w1, w2)
    np.testing.assert_allclose(np.asarray(out), np.asarray(ref),
                               rtol=1e-5, atol=1e-5)

    print("KERNEL_OK")
</pallas_src>

<mosaic_0001>
module attributes {stable_mosaic.version = 11 : i64} {
  func.func @_scale_kernel(%arg0: i32, %arg1: i32, %arg2: memref<1x16x1xf32, #tpu.memory_space<vmem>>, %arg3: memref<1x16x256xf32, #tpu.memory_space<vmem>>, %arg4: memref<1x16x256xf32, #tpu.memory_space<vmem>>) attributes {dimension_semantics = [#tpu.dimension_semantics<parallel>, #tpu.dimension_semantics<parallel>], iteration_bounds = array<i64: 2, 1>, scalar_prefetch = 0 : i64, scratch_operands = 0 : i64, tpu.core_type = #tpu.core_type<tc>, window_params = [{transform_indices = @transform_0, window_bounds = array<i64: 1, 16, 1>}, {transform_indices = @transform_1, window_bounds = array<i64: 1, 16, 256>}, {transform_indices = @transform_2, window_bounds = array<i64: 1, 16, 256>}]} {
    %c0 = arith.constant 0 : index
    %c0_0 = arith.constant 0 : index
    %c0_1 = arith.constant 0 : index
    %0 = vector.load %arg3[%c0, %c0_0, %c0_1] : memref<1x16x256xf32, #tpu.memory_space<vmem>>, vector<1x16x256xf32>
    %c0_2 = arith.constant 0 : index
    %c0_3 = arith.constant 0 : index
    %c0_4 = arith.constant 0 : index
    %1 = vector.load %arg2[%c0_2, %c0_3, %c0_4] : memref<1x16x1xf32, #tpu.memory_space<vmem>>, vector<1x16x1xf32>
    %2 = vector.broadcast %1 : vector<1x16x1xf32> to vector<1x16x256xf32>
    %3 = arith.mulf %0, %2 : vector<1x16x256xf32>
    %c0_5 = arith.constant 0 : index
    %c0_6 = arith.constant 0 : index
    %c0_7 = arith.constant 0 : index
    %4 = vector.load %arg4[%c0_5, %c0_6, %c0_7] : memref<1x16x256xf32, #tpu.memory_space<vmem>>, vector<1x16x256xf32>
    tpu.vector_store %arg4[%c0_5, %c0_6, %c0_7], %3 {strides = array<i32>} : memref<1x16x256xf32, #tpu.memory_space<vmem>>, vector<1x16x256xf32>,
    return
  }
  func.func @transform_0(%arg0: i32, %arg1: i32) -> (i32, i32, i32) {
    %c0_i32 = arith.constant 0 : i32
    %c0_i32_0 = arith.constant 0 : i32
    %c0_i32_1 = arith.constant 0 : i32
    return %arg0, %c0_i32, %c0_i32_0 : i32, i32, i32
  }
  func.func @transform_1(%arg0: i32, %arg1: i32) -> (i32, i32, i32) {
    %c0_i32 = arith.constant 0 : i32
    %c0_i32_0 = arith.constant 0 : i32
    return %arg0, %c0_i32, %arg1 : i32, i32, i32
  }
  func.func @transform_2(%arg0: i32, %arg1: i32) -> (i32, i32, i32) {
    %c0_i32 = arith.constant 0 : i32
    %c0_i32_0 = arith.constant 0 : i32
    return %arg0, %c0_i32, %arg1 : i32, i32, i32
  }
}

</mosaic_0001>

<llo_original>
// kernel: tpu_custom_call.1
$region0: #{tpu_custom_call.1}
  #allocation0 [shape = 'u32[]', space=smem, size = 0x4, offset = 0x4, fixed_abs, tag = 'smem constant byte address 0x4 - core index']
  #allocation1 [shape = 'u32[144,128]{1,0:T(1,128)}', space=vmem, size = 0x12000, scoped, tag = 'internal scratch']
  %s0 = inlined_call_operand.vmem [shape: f32[2,16,1], index: 0, kind: input, shape index: {}]
  %s1 = inlined_call_operand.hbm [shape: f32[2,16,256], index: 1, kind: input, shape index: {}]
  %s2 = inlined_call_operand.hbm [shape: f32[2,16,256], index: 2, kind: output, shape index: {}]
  %s3 = sld [smem:[#allocation0]]
  $region45: #{tpu_custom_call.1} parent=0
    _
  %s5 = ssub.s32 1, %s3
  %s6 = scalar_select 0, %s5, %s3
  $region1: #{tpu_custom_call.1} parent=0
    #allocation2 [shape = 'u8[32768]{0}', space=vmem, size = 0x8000, scoped, tag = 'input window, operand 1']
    #allocation3 [shape = 's32[2]{0}', space=sflag, size = 0x8, scoped, tag = 'scoped memory for tpu_custom_call.1']
    #allocation4 [shape = 's32[2]{0}', space=sflag, size = 0x8, scoped, tag = 'scoped memory for tpu_custom_call.1']
    #allocation5 [shape = 'u8[32768]{0}', space=vmem, size = 0x8000, scoped, tag = 'output window, operand 0']
    %7 = vsyncpa [#allocation3], 0
    %s8 = scalar_lea.sflag [#allocation3], 1
    %9 = vsyncpa %s8, 0
    %10 = vsyncpa [#allocation4], 0
    %s11 = scalar_lea.sflag [#allocation4], 1
    %12 = vsyncpa %s11, 0
    loop: start=0, step=1, limit=4
    $region2: #{tpu_custom_call.1} parent=1 // loop_pre_header
      _
    $region3: #{tpu_custom_call.1} parent=1 // loop_header
      %s14 = sphi 0, %s18
      %p15 = scmp.ge.s32.totalorder %s14, 4
      %s21 = sphi 0, %s33
      %s22 = sphi 0, %s29
      %s23 = sphi 0, %s21
      %s24 = sphi 0, %s22
      %s25 = sphi 0, %s23
      %s26 = sphi 0, %s24
      %s36 = sphi 0, %s38
      %s39 = sphi 0, %s36
      %s40 = sphi 0, %s39
      %s56 = sphi 0, %s40
      %s64 = sphi 0, %s66
      %s67 = sphi 0, %s64
      %s68 = sphi 0, %s67
      %s84 = sphi 0, %s68
      %s92 = sphi 0, %s94
      %s95 = sphi 0, %s92
      %s96 = sphi 0, %s95
      %s112 = sphi 0, %s96
    $region4: #{tpu_custom_call.1} parent=1 // loop_header_branch
      %17 = sbr.rel (%p15) target = $region8
    $region5: #{tpu_custom_call.1} parent=1 // loop_body
      %s19 = ssub.s32 %s14, 1
      %s20 = ssub.s32 %s14, 2
      %s27 = sadd.s32 1, %s22
      %p28 = scmp.ge.s32.totalorder %s27, 1
      %s29 = scalar_select %p28, 0, %s27
      %s30 = sadd.s32 1, %s21
      %s31 = scalar_select %p28, %s30, %s21
      %p32 = scmp.ge.s32.totalorder %s31, 2
      %s33 = scalar_select %p32, 0, %s31
      %s34 = ssub.s32 %s21, %s33
      %p35 = scmp.eq.s32.totalorder %s34, 0
      %s37 = sadd.s32 %s36, 1
      %s38 = scalar_select %p35, %s36, %s37
      %p41 = pneg %p35
      %p42 = scmp.eq.s32.totalorder %s14, 1
      %p43 = por %p41, %p42
      %p44 = scmp.ne.s32.totalorder %s36, %s39
      %p45 = scmp.eq.s32.totalorder %s14, 0
      %p46 = por %p44, %p45
      %p47 = scmp.ne.s32.totalorder %s36, %s39
      %p48 = scmp.eq.s32.totalorder %s19, 1
      %p49 = por %p47, %p48
      %p50 = scmp.ne.s32.totalorder %s39, %s40
      %p51 = scmp.eq.s32.totalorder %s19, 0
      %p52 = por %p50, %p51
      %p53 = scmp.ne.s32.totalorder %s39, %s40
      %p54 = scmp.eq.s32.totalorder %s20, 1
      %p55 = por %p53, %p54
      %p57 = scmp.ne.s32.totalorder %s40, %s56
      %p58 = scmp.eq.s32.totalorder %s20, 0
      %p59 = por %p57, %p58
      %s60 = ssub.s32 %s21, %s33
      %s61 = ssub.s32 %s22, %s29
      %s62 = sor.u32 %s60, %s61
      %p63 = scmp.eq.s32.totalorder %s62, 0
      %s65 = sadd.s32 %s64, 1
      %s66 = scalar_select %p63, %s64, %s65
      %p69 = pneg %p63
      %p70 = scmp.eq.s32.totalorder %s14, 1
      %p71 = por %p69, %p70
      %p72 = scmp.ne.s32.totalorder %s64, %s67
      %p73 = scmp.eq.s32.totalorder %s14, 0
      %p74 = por %p72, %p73
      %p75 = scmp.ne.s32.totalorder %s64, %s67
      %p76 = scmp.eq.s32.totalorder %s19, 1
      %p77 = por %p75, %p76
      %p78 = scmp.ne.s32.totalorder %s67, %s68
      %p79 = scmp.eq.s32.totalorder %s19, 0
      %p80 = por %p78, %p79
      %p81 = scmp.ne.s32.totalorder %s67, %s68
      %p82 = scmp.eq.s32.totalorder %s20, 1
      %p83 = por %p81, %p82
      %p85 = scmp.ne.s32.totalorder %s68, %s84
      %p86 = scmp.eq.s32.totalorder %s20, 0
      %p87 = por %p85, %p86
      %s88 = ssub.s32 %s21, %s33
      %s89 = ssub.s32 %s22, %s29
      %s90 = sor.u32 %s88, %s89
      %p91 = scmp.eq.s32.totalorder %s90, 0
      %s93 = sadd.s32 %s92, 1
      %s94 = scalar_select %p91, %s92, %s93
      %p97 = pneg %p91
      %p98 = scmp.eq.s32.totalorder %s14, 1
      %p99 = por %p97, %p98
      %p100 = scmp.ne.s32.totalorder %s92, %s95
      %p101 = scmp.eq.s32.totalorder %s14, 0
      %p102 = por %p100, %p101
      %p103 = scmp.ne.s32.totalorder %s92, %s95
      %p104 = scmp.eq.s32.totalorder %s19, 1
      %p105 = por %p103, %p104
      %p106 = scmp.ne.s32.totalorder %s95, %s96
      %p107 = scmp.eq.s32.totalorder %s19, 0
      %p108 = por %p106, %p107
      %p109 = scmp.ne.s32.totalorder %s95, %s96
      %p110 = scmp.eq.s32.totalorder %s20, 1
      %p111 = por %p109, %p110
      %p113 = scmp.ne.s32.totalorder %s96, %s112
      %p114 = scmp.eq.s32.totalorder %s20, 0
      %p115 = por %p113, %p114
      %p116 = scmp.le.s32.totalorder 1, %s14
      %p117 = scmp.lt.s32.totalorder %s14, 3
      %p118 = pnand %p116, %p117
      %p119 = pneg %p118
      // Predicated region
      $region9: #{tpu_custom_call.1} parent=5 // pred_check
        _
      $region10: #{tpu_custom_call.1} parent=5 // pred_check_branch
        %121 = sbr.rel (%p118) target = $region12
      $region11: #{tpu_custom_call.1} parent=5 // pred_region
        %s122 = ssub.s32 %s14, 1
      $region12: #{tpu_custom_call.1} parent=5 // pred_fallthru
        _
      %p123 = scmp.lt.s32.totalorder %s14, 2
      // Predicated region
      $region13: #{tpu_custom_call.1} parent=5 // pred_check
        %p124 = pneg %p123
      $region14: #{tpu_custom_call.1} parent=5 // pred_check_branch
        %126 = sbr.rel (%p124) target = $region16
      $region15: #{tpu_custom_call.1} parent=5 // pred_region
        // Predicated region
        $region17: #{tpu_custom_call.1} parent=15 // pred_check
          %p127 = pneg %p46
        $region18: #{tpu_custom_call.1} parent=15 // pred_check_branch
          %129 = sbr.rel (%p127) target = $region20
        $region19: #{tpu_custom_call.1} parent=15 // pred_region
          %p130 = scmp.lt.s32.totalorder %s21, 1
          %s131 = scalar_select %p130, %s21, 1
          %s132 = smul.addr %s131, 2
          %s133 = smul.addr %s132, 8
          %s134 = scalar_lea.vmem %s0, %s133
        $region20: #{tpu_custom_call.1} parent=15 // pred_fallthru
          _
        // Predicated region
        $region21: #{tpu_custom_call.1} parent=15 // pred_check
          %p135 = pneg %p74
        $region22: #{tpu_custom_call.1} parent=15 // pred_check_branch
          %137 = sbr.rel (%p135) target = $region24
        $region23: #{tpu_custom_call.1} parent=15 // pred_region
          %s138 = sand.u32 %s64, 1
          %s139 = scalar_lea.sflag [#allocation3], %s138
          %s140 = sand.u32 %s64, 1
          %s141 = smul.addr %s140, 32
          %s142 = scalar_lea.vmem [#allocation2], %s141
          %s143 = smul.u32 2, %s22
          %s145 = ssub.s32 512, 512
          %146 = vsyncadd %s139, %s145
          %s147 = smul.addr %s21, 4
          %s148 = sadd.s32 %s143, %s147
          %s149 = smul.addr %s148, 128
          %s150 = scalar_lea.hbm %s1, %s149
          %s151 = sshll.u32 %s142, 4
          %s152 = int_to_ptr.vmem [resolvable:$true] %s151
          %157 = dma.hbm_to_vmem [thread:$0]  %s150, 512, %s152, %s139, 256, 256, 16
        $region24: #{tpu_custom_call.1} parent=15 // pred_fallthru
          _
      $region16: #{tpu_custom_call.1} parent=5 // pred_fallthru
        _
      %p158 = scmp.le.s32.totalorder 1, %s14
      %p159 = scmp.lt.s32.totalorder %s14, 3
      %p160 = pnand %p158, %p159
      %p161 = pneg %p160
      // Predicated region
      $region25: #{tpu_custom_call.1} parent=5 // pred_check
        _
      $region26: #{tpu_custom_call.1} parent=5 // pred_check_branch
        %163 = sbr.rel (%p160) target = $region28
      $region27: #{tpu_custom_call.1} parent=5 // pred_region
        %s164 = ssub.s32 %s14, 1
        %s165 = sand.u32 %s67, 1
        %s166 = scalar_lea.sflag [#allocation3], %s165
        %s167 = sand.u32 %s67, 1
        %s168 = smul.addr %s167, 32
        %s169 = scalar_lea.vmem [#allocation2], %s168
        // Predicated region
        $region29: #{tpu_custom_call.1} parent=27 // pred_check
          %p170 = pneg %p80
        $region30: #{tpu_custom_call.1} parent=27 // pred_check_branch
          %172 = sbr.rel (%p170) target = $region32
        $region31: #{tpu_custom_call.1} parent=27 // pred_region
          %173 = dma.done %s166, 512
        $region32: #{tpu_custom_call.1} parent=27 // pred_fallthru
          _
        %p174 = scmp.lt.s32.totalorder %s23, 1
        %s175 = scalar_select %p174, %s23, 1
        %s176 = smul.addr %s175, 2
        %s177 = smul.addr %s176, 8
        %s178 = scalar_lea.vmem %s0, %s177
        %p179 = pneg %p52
        %p180 = pneg %p49
        %s181 = sand.u32 %s67, 1
        %s182 = scalar_lea.sflag [#allocation3], %s181
        %s183 = sand.u32 %s67, 1
        %s184 = smul.addr %s183, 32
        %s185 = scalar_lea.vmem [#allocation2], %s184
        %p186 = pneg %p80
        %p187 = pneg %p77
        %p188 = pneg %p108
        %p189 = pneg %p105
        %s190 = sand.u32 %s95, 1
        %s191 = scalar_lea.sflag [#allocation4], %s190
        %s192 = sand.u32 %s95, 1
        %s193 = smul.addr %s192, 32
        %s194 = scalar_lea.vmem [#allocation5], %s193
        %p195 = scmp.lt.s32.totalorder %s23, 1
        %s196 = scalar_select %p195, %s23, 1
        %s197 = smul.addr %s196, 2
        %s198 = smul.addr %s197, 8
        %s199 = scalar_lea.vmem %s0, %s198
        %s200 = smul.u32 2, %s24
        %s201 = smul.u32 2, %s24
        %v202 = vld [vmem:[%s169] sm:$0xff]
        %v203 = vld [vmem:[%s169 + $0x8] sm:$0xff]
        %v204 = vld [vmem:[%s169 + $0x10] sm:$0xff]
        %v205 = vld [vmem:[%s169 + $0x18] sm:$0xff]
        %v206 = vld [vmem:[%s199] sm:$0xff]
        %v207 = vld [vmem:[%s199 + $0x8] sm:$0xff]
        %209 = vset.pattern.permute.xlu0 0
        %210 = vperm.xlu0 %209, %v206
        %v211 = vpop.permute.xlu0 %210
        %214 = vset.pattern.permute.xlu0 0
        %215 = vperm.xlu0 %214, %v207
        %v216 = vpop.permute.xlu0 %215
        %v218 = vmul.f32 %v202, %v211
        %v219 = vmul.f32 %v203, %v211
        %v220 = vmul.f32 %v204, %v216
        %v221 = vmul.f32 %v205, %v216
        %222 = vst [vmem:[%s194] sm:$0xff] %v218
        %223 = vst [vmem:[%s194 + $0x8] sm:$0xff] %v219
        %224 = vst [vmem:[%s194 + $0x10] sm:$0xff] %v220
        %225 = vst [vmem:[%s194 + $0x18] sm:$0xff] %v221
        %s226 = sand.u32 %s95, 1
        %s227 = scalar_lea.sflag [#allocation4], %s226
        %s228 = sand.u32 %s95, 1
        %s229 = smul.addr %s228, 32
        %s230 = scalar_lea.vmem [#allocation5], %s229
        // Predicated region
        $region33: #{tpu_custom_call.1} parent=27 // pred_check
          %p231 = pneg %p105
        $region34: #{tpu_custom_call.1} parent=27 // pred_check_branch
          %233 = sbr.rel (%p231) target = $region36
        $region35: #{tpu_custom_call.1} parent=27 // pred_region
          %s234 = smul.u32 2, %s24
          %s236 = ssub.s32 512, 512
          %237 = vsyncadd %s227, %s236
          %s238 = smul.addr %s23, 4
          %s239 = sadd.s32 %s234, %s238
          %s240 = smul.addr %s239, 128
          %s241 = scalar_lea.hbm %s2, %s240
          %s242 = sshll.u32 %s230, 4
          %s243 = int_to_ptr.vmem [resolvable:$true] %s242
          %248 = dma.vmem_to_hbm [thread:$0]  %s243, 512, %s241, %s227, 256, 256, 16
        $region36: #{tpu_custom_call.1} parent=27 // pred_fallthru
          _
      $region28: #{tpu_custom_call.1} parent=5 // pred_fallthru
        _
      %p249 = scmp.le.s32.totalorder 2, %s14
      // Predicated region
      $region37: #{tpu_custom_call.1} parent=5 // pred_check
        %p250 = pneg %p249
      $region38: #{tpu_custom_call.1} parent=5 // pred_check_branch
        %252 = sbr.rel (%p250) target = $region40
      $region39: #{tpu_custom_call.1} parent=5 // pred_region
        %s253 = ssub.s32 %s14, 2
        // Predicated region
        $region41: #{tpu_custom_call.1} parent=39 // pred_check
          %p254 = pneg %p111
        $region42: #{tpu_custom_call.1} parent=39 // pred_check_branch
          %256 = sbr.rel (%p254) target = $region44
        $region43: #{tpu_custom_call.1} parent=39 // pred_region
          %s257 = sand.u32 %s96, 1
          %s258 = scalar_lea.sflag [#allocation4], %s257
          %s259 = sand.u32 %s96, 1
          %s260 = smul.addr %s259, 32
          %s261 = scalar_lea.vmem [#allocation5], %s260
          %262 = dma.done %s258, 512
        $region44: #{tpu_custom_call.1} parent=39 // pred_fallthru
          _
      $region40: #{tpu_custom_call.1} parent=5 // pred_fallthru
        _
    $region6: #{tpu_custom_call.1} parent=1 // loop_footer
      %s18 = sadd.s32 1, %s14
    $region7: #{tpu_custom_call.1} parent=1 // loop_footer_branch
      %13 = sbr.rel target = $region3
    $region8: #{tpu_custom_call.1} parent=1 // loop_exit
      _
    %263 = vsyncpa [#allocation3], 1
    %s264 = scalar_lea.sflag [#allocation3], 1
    %265 = vsyncpa %s264, 1
    %266 = vsyncpa [#allocation4], 1
    %s267 = scalar_lea.sflag [#allocation4], 1
    %268 = vsyncpa %s267, 1

</llo_original>
